<compile_context>
chip_gen: v7x
topology: tpu7x:2x2x1
jax: 0.10.0
libtpu: 0.0.40
codegen_flags: <defaults>
</compile_context>

<pallas_src>
import numpy as np
import jax
import jax.numpy as jnp
from jax.experimental import pallas as pl
from jax.experimental.pallas import tpu as pltpu


def _passthrough_kernel(fdmx_ref, x_ref, fdmx_out_ref, x_out_ref, flag_ref):
    # Outputs alias the inputs (see input_output_aliases below), so the
    # correct data already sits in the output HBM buffers — nothing to move.
    del fdmx_ref, x_ref, fdmx_out_ref, x_out_ref
    flag_ref[0] = jnp.int32(1)  # cheap SMEM scalar write; no HBM traffic


def fdm_refine_block_forward(fdmx: jax.Array, x: jax.Array):
    """Pallas implementation of fdm_refine_block.forward(fdmx, x) -> (fdmx, x).

    Each output aliases its input HBM buffer, so the kernel performs zero data
    movement. As with any aliased/donated buffer, callers should use the
    returned arrays rather than the original inputs afterwards.
    """
    any_spec = pl.BlockSpec(memory_space=pl.ANY)  # leave arrays in place (HBM)
    return pl.pallas_call(
        _passthrough_kernel,
        out_shape=(
            jax.ShapeDtypeStruct(fdmx.shape, fdmx.dtype),
            jax.ShapeDtypeStruct(x.shape, x.dtype),
        ),
        in_specs=[any_spec, any_spec],
        out_specs=(any_spec, any_spec),
        scratch_shapes=[pltpu.SMEM((1,), jnp.int32)],
        # Pure pass-through: output i is the same HBM buffer as input i.
        input_output_aliases={0: 0, 1: 1},
        # Tell XLA's scheduler this custom call is trivial (no flops, no bytes).
        cost_estimate=pl.CostEstimate(flops=0, transcendentals=0, bytes_accessed=0),
    )(fdmx, x)


if __name__ == "__main__":
    key = jax.random.PRNGKey(0)
    k1, k2 = jax.random.split(key)

    # Small shapes consistent with a feature-map pair (NCHW).
    fdmx = jax.random.normal(k1, (2, 4, 16, 16), dtype=jnp.float32)
    x = jax.random.normal(k2, (2, 4, 16, 16), dtype=jnp.float32)

    # Host copies for verification: the inputs are aliased (donated) into the
    # outputs, so compare against these rather than the original device arrays.
    fdmx_np = np.asarray(jax.device_get(fdmx))
    x_np = np.asarray(jax.device_get(x))

    out_fdmx, out_x = fdm_refine_block_forward(fdmx, x)
    jax.block_until_ready((out_fdmx, out_x))

    assert out_fdmx.shape == fdmx_np.shape and out_fdmx.dtype == jnp.float32
    assert out_x.shape == x_np.shape and out_x.dtype == jnp.float32
    assert np.array_equal(np.asarray(jax.device_get(out_fdmx)), fdmx_np)
    assert np.array_equal(np.asarray(jax.device_get(out_x)), x_np)

    print("KERNEL_OK")
</pallas_src>

<mosaic_0001>
module attributes {stable_mosaic.version = 11 : i64} {
  func.func @_passthrough_kernel(%arg0: memref<2x4x16x16xf32, #tpu.memory_space<any>>, %arg1: memref<2x4x16x16xf32, #tpu.memory_space<any>>, %arg2: memref<2x4x16x16xf32, #tpu.memory_space<any>>, %arg3: memref<2x4x16x16xf32, #tpu.memory_space<any>>, %arg4: memref<1xi32, #tpu.memory_space<smem>>) attributes {dimension_semantics = [], scalar_prefetch = 0 : i64, scratch_operands = 1 : i64, tpu.core_type = #tpu.core_type<tc>} {
    %c1_i32 = arith.constant 1 : i32
    %c0 = arith.constant 0 : index
    %0 = memref.load %arg4[%c0] : memref<1xi32, #tpu.memory_space<smem>>
    memref.store %c1_i32, %arg4[%c0] : memref<1xi32, #tpu.memory_space<smem>>
    return
  }
}

</mosaic_0001>

<llo_original>
// kernel: tpu_custom_call.1
$region0: #{tpu_custom_call.1}
  #allocation0 [shape = 'u32[]', space=smem, size = 0x4, offset = 0x4, fixed_abs, tag = 'smem constant byte address 0x4 - core index']
  #allocation1 [shape = 'u32[144,128]{1,0:T(1,128)}', space=vmem, size = 0x12000, scoped, tag = 'internal scratch']
  #allocation2 [shape = 's32[1]{0:T(128)}', space=smem, size = 0x200, scoped, tag = 'scratch operand']
  %s0 = inlined_call_operand.hbm [shape: f32[2,4,16,16], index: 0, kind: input, shape index: {}, may-alias: {0,2}]
  %s1 = inlined_call_operand.hbm [shape: f32[2,4,16,16], index: 1, kind: input, shape index: {}, may-alias: {1,3}]
  %s2 = inlined_call_operand.hbm [shape: f32[2,4,16,16], index: 2, kind: output, shape index: {0}, may-alias: {0,2}]
  %s3 = inlined_call_operand.hbm [shape: f32[2,4,16,16], index: 3, kind: output, shape index: {1}, may-alias: {1,3}]
  %4 = xla_tuple %s2, %s3
  %s5 = sld [smem:[#allocation0]]
  $region2: #{tpu_custom_call.1} parent=0
    _
  %s7 = ssub.s32 1, %s5
  %s8 = scalar_select 0, %s7, %s5
  %s9 = scalar_lea.smem [#allocation2], 0
  %10 = sst [smem:[%s9]] 1

</llo_original>
